<compile_context>
chip_gen: v6e
topology: v6e:2x2x1
jax: 0.10.0
libtpu: 0.0.40
codegen_flags: <defaults>
</compile_context>

<pallas_src>
import functools

import jax
import jax.numpy as jnp
from jax.experimental import pallas as pl
from jax.experimental.pallas import tpu as pltpu


def _scale_ffn_kernel(scale_ref, x_ref, w1_ref, b1_ref, w2_ref, b2_ref, o_ref,
                      *, use_bf16_matmul: bool):
    # x_ref: (TM, D), w1_ref: (D, H), b1_ref: (1, H), w2_ref: (H, D),
    # b2_ref: (1, D), o_ref: (TM, D).  scale_ref: SMEM (1,) f32.
    x = x_ref[...]
    w1 = w1_ref[...]
    w2 = w2_ref[...]
    if use_bf16_matmul:
        # MXU is bf16-native on v5e/v6e/v7x; accumulation stays f32 below.
        x = x.astype(jnp.bfloat16)
        w1 = w1.astype(jnp.bfloat16)
        w2 = w2.astype(jnp.bfloat16)

    h = jnp.dot(x, w1, preferred_element_type=jnp.float32)
    h = h + b1_ref[...].astype(jnp.float32)
    # SiLU / Swish epilogue in f32 (v5e has no bf16 VPU/EUP; sigmoid is EUP work).
    h = h * jax.nn.sigmoid(h)
    y = jnp.dot(h.astype(w2.dtype), w2, preferred_element_type=jnp.float32)
    y = y + b2_ref[...].astype(jnp.float32)
    # Scale module: fn(x) * scale (scale read from SMEM, no retrace per value).
    o_ref[...] = (y * scale_ref[0]).astype(o_ref.dtype)


def _round_up(n: int, m: int) -> int:
    return ((n + m - 1) // m) * m


def _vmem_budget_bytes() -> int:
    """3/4 of per-core VMEM; conservative 48 MiB (v7x-safe) if query fails."""
    cap = 64 * 1024 * 1024
    try:
        queried = pltpu.get_tpu_info().vmem_capacity_bytes
        if isinstance(queried, int) and queried > 0:
            cap = queried
    except Exception:
        pass
    return (cap * 3) // 4


def _estimate_vmem_bytes(tm, d, h, x_isz, w_isz, b_isz) -> int:
    x_tiles = 2 * tm * d * x_isz        # streamed x tile, double-buffered
    o_tiles = 2 * tm * d * x_isz        # output tile, double-buffered
    weights = (d * h + h * d) * w_isz   # resident, single-buffered (Buffered(1))
    biases = (h + d) * b_isz
    interm = tm * h * 4 + tm * d * 4    # f32 hidden + f32 epilogue temporaries
    return x_tiles + o_tiles + weights + biases + interm


def scale_ffn(x, w1, b1, w2, b2, scale, *, tm: int = 1024,
              use_bf16_matmul: bool = False, vmem_limit_bytes=None):
    """x: (B, S, D). Returns fn(x) * scale with fn = Linear -> SiLU -> Linear."""
    B, S, D = x.shape
    H = w1.shape[1]
    M = B * S

    x2d = x.reshape(M, D)                       # free (contiguous view)
    b1r = jnp.reshape(b1, (1, H))
    b2r = jnp.reshape(b2, (1, D))
    scale_arr = jnp.asarray([scale], dtype=jnp.float32)

    # Row tiling: TM multiple of 8 (sublanes). No M padding — Pallas masks the
    # ragged last block; the clipped rows are computed on garbage but never kept.
    TM = min(_round_up(tm, 8), _round_up(M, 8))
    if M > 8:
        # Guarantee >= 2 grid steps so the "parallel" axis can shard across
        # v7x's two TensorCores (neutral on single-TC v5e/v6e).
        TM = min(TM, _round_up(pl.cdiv(M, 2), 8))

    # Shrink TM until blocks + f32 intermediates fit the per-core VMEM budget.
    budget = _vmem_budget_bytes()
    x_isz = x.dtype.itemsize
    w_isz = w1.dtype.itemsize
    b_isz = b1.dtype.itemsize
    while TM > 8 and _estimate_vmem_bytes(TM, D, H, x_isz, w_isz, b_isz) > budget:
        TM = max(8, _round_up(TM // 2, 8))
    # TODO(synk): weights are fully VMEM-resident; very large D*H (e.g. 1024x4096
    # f32 on v7x) would need an H-tiled fallback (2nd 'arbitrary' grid axis +
    # f32 accumulator scratch) instead of only shrinking TM.

    est = _estimate_vmem_bytes(TM, D, H, x_isz, w_isz, b_isz)
    if vmem_limit_bytes is None:
        # Cover our buffers + compiler scratch/semaphores, never full physical
        # VMEM (headroom on v7x; not needlessly low on 128-MiB v5e/v6e either).
        vmem_limit_bytes = int(min(budget, max(32 * 1024 * 1024,
                                               est + 16 * 1024 * 1024)))

    grid = (pl.cdiv(M, TM),)

    cost = pl.CostEstimate(
        flops=int(4 * M * D * H),               # two matmuls: 2*M*D*H each
        transcendentals=int(M * H),             # one sigmoid per hidden element
        bytes_accessed=int(2 * M * D * x_isz    # x in, y out
                           + 2 * D * H * w_isz  # weights
                           + (H + D) * b_isz),  # biases
    )

    def _resident(shape):
        # Grid-invariant operand: constant index_map + single buffer (no point
        # double-buffering something that is never re-fetched).
        return pl.BlockSpec(shape, lambda i: (0, 0), pipeline_mode=pl.Buffered(1))

    out2d = pl.pallas_call(
        functools.partial(_scale_ffn_kernel, use_bf16_matmul=use_bf16_matmul),
        out_shape=jax.ShapeDtypeStruct((M, D), x.dtype),
        grid=grid,
        in_specs=[
            pl.BlockSpec(memory_space=pltpu.MemorySpace.SMEM),  # scale
            pl.BlockSpec((TM, D), lambda i: (i, 0)),            # x tile (streamed)
            _resident((D, H)),                                  # w1 (resident)
            _resident((1, H)),                                  # b1
            _resident((H, D)),                                  # w2 (resident)
            _resident((1, D)),                                  # b2
        ],
        out_specs=pl.BlockSpec((TM, D), lambda i: (i, 0)),
        compiler_params=pltpu.CompilerParams(
            # Row tiles are independent -> shard across TCs on v7x megacore.
            dimension_semantics=("parallel",),
            vmem_limit_bytes=vmem_limit_bytes,
        ),
        cost_estimate=cost,
    )(scale_arr, x2d, w1, b1r, w2, b2r)

    return out2d.reshape(B, S, D)


if __name__ == "__main__":
    # Small shapes consistent with the module's usage in a conformer block.
    B, S, D, H = 2, 8, 32, 64
    scale = 0.5

    key = jax.random.PRNGKey(0)
    kx, kw1, kb1, kw2, kb2 = jax.random.split(key, 5)

    x = jax.random.normal(kx, (B, S, D), dtype=jnp.float32)
    # Deterministic parameter init (synthetic; no checkpoint load).
    w1 = jax.random.normal(kw1, (D, H), dtype=jnp.float32) * (1.0 / D) ** 0.5
    b1 = jax.random.normal(kb1, (1, H), dtype=jnp.float32) * 0.01
    w2 = jax.random.normal(kw2, (H, D), dtype=jnp.float32) * (1.0 / H) ** 0.5
    b2 = jax.random.normal(kb2, (1, D), dtype=jnp.float32) * 0.01

    out = scale_ffn(x, w1, b1, w2, b2, scale)
    out = jax.block_until_ready(out)

    # Reference check in plain JAX (same math as PyTorch Scale(scale, fn)).
    h_ref = x.reshape(B * S, D) @ w1 + b1
    h_ref = h_ref * jax.nn.sigmoid(h_ref)
    y_ref = (h_ref @ w2 + b2).reshape(B, S, D) * scale
    # Tolerance slightly loosened: MXU default precision for f32 operands is
    # multi-pass bf16, which is close but not bit-exact to XLA's reference dot.
    assert jnp.allclose(out, y_ref, atol=2e-5, rtol=2e-5), "mismatch vs reference"

    print("KERNEL_OK")
</pallas_src>

<mosaic_0001>
module attributes {stable_mosaic.version = 11 : i64} {
  func.func @_scale_ffn_kernel(%arg0: i32, %arg1: memref<1xf32, #tpu.memory_space<smem>>, %arg2: memref<8x32xf32, #tpu.memory_space<vmem>>, %arg3: memref<32x64xf32, #tpu.memory_space<vmem>>, %arg4: memref<1x64xf32, #tpu.memory_space<vmem>>, %arg5: memref<64x32xf32, #tpu.memory_space<vmem>>, %arg6: memref<1x32xf32, #tpu.memory_space<vmem>>, %arg7: memref<8x32xf32, #tpu.memory_space<vmem>>) attributes {dimension_semantics = [#tpu.dimension_semantics<parallel>], iteration_bounds = array<i64: 2>, scalar_prefetch = 0 : i64, scratch_operands = 0 : i64, tpu.core_type = #tpu.core_type<tc>, window_params = [{transform_indices = @transform_0, window_bounds = array<i64: 1>}, {transform_indices = @transform_1, window_bounds = array<i64: 8, 32>}, {pipeline_mode = #tpu.pipeline_mode<synchronous>, transform_indices = @transform_2, window_bounds = array<i64: 32, 64>}, {pipeline_mode = #tpu.pipeline_mode<synchronous>, transform_indices = @transform_3, window_bounds = array<i64: 1, 64>}, {pipeline_mode = #tpu.pipeline_mode<synchronous>, transform_indices = @transform_4, window_bounds = array<i64: 64, 32>}, {pipeline_mode = #tpu.pipeline_mode<synchronous>, transform_indices = @transform_5, window_bounds = array<i64: 1, 32>}, {transform_indices = @transform_6, window_bounds = array<i64: 8, 32>}]} {
    %c0 = arith.constant 0 : index
    %c0_0 = arith.constant 0 : index
    %0 = vector.load %arg2[%c0, %c0_0] : memref<8x32xf32, #tpu.memory_space<vmem>>, vector<8x32xf32>
    %c0_1 = arith.constant 0 : index
    %c0_2 = arith.constant 0 : index
    %1 = vector.load %arg3[%c0_1, %c0_2] : memref<32x64xf32, #tpu.memory_space<vmem>>, vector<32x64xf32>
    %c0_3 = arith.constant 0 : index
    %c0_4 = arith.constant 0 : index
    %2 = vector.load %arg5[%c0_3, %c0_4] : memref<64x32xf32, #tpu.memory_space<vmem>>, vector<64x32xf32>
    %cst = arith.constant dense<0.000000e+00> : vector<8x64xf32>
    %3 = tpu.matmul %0, %1, %cst {dimension_numbers = #tpu.dot_dimension_numbers<[1], [0], [0], [1], [0, 0, 1, 1], [], []>} : vector<8x32xf32>, vector<32x64xf32>, vector<8x64xf32> -> vector<8x64xf32>
    %c0_5 = arith.constant 0 : index
    %c0_6 = arith.constant 0 : index
    %4 = vector.load %arg4[%c0_5, %c0_6] : memref<1x64xf32, #tpu.memory_space<vmem>>, vector<1x64xf32>
    %5 = vector.broadcast %4 : vector<1x64xf32> to vector<8x64xf32>
    %6 = arith.addf %3, %5 : vector<8x64xf32>
    %7 = arith.negf %6 : vector<8x64xf32>
    %8 = math.exp %7 : vector<8x64xf32>
    %cst_7 = arith.constant 1.000000e+00 : f32
    %9 = vector.broadcast %cst_7 : f32 to vector<8x64xf32>
    %10 = arith.addf %9, %8 : vector<8x64xf32>
    %11 = arith.divf %9, %10 : vector<8x64xf32>
    %12 = arith.mulf %6, %11 : vector<8x64xf32>
    %cst_8 = arith.constant dense<0.000000e+00> : vector<8x32xf32>
    %13 = tpu.matmul %12, %2, %cst_8 {dimension_numbers = #tpu.dot_dimension_numbers<[1], [0], [0], [1], [0, 0, 1, 1], [], []>} : vector<8x64xf32>, vector<64x32xf32>, vector<8x32xf32> -> vector<8x32xf32>
    %c0_9 = arith.constant 0 : index
    %c0_10 = arith.constant 0 : index
    %14 = vector.load %arg6[%c0_9, %c0_10] : memref<1x32xf32, #tpu.memory_space<vmem>>, vector<1x32xf32>
    %15 = vector.broadcast %14 : vector<1x32xf32> to vector<8x32xf32>
    %16 = arith.addf %13, %15 : vector<8x32xf32>
    %c0_11 = arith.constant 0 : index
    %17 = memref.load %arg1[%c0_11] : memref<1xf32, #tpu.memory_space<smem>>
    %18 = vector.broadcast %17 : f32 to vector<8x32xf32>
    %19 = arith.mulf %16, %18 : vector<8x32xf32>
    %c0_12 = arith.constant 0 : index
    %c0_13 = arith.constant 0 : index
    %20 = vector.load %arg7[%c0_12, %c0_13] : memref<8x32xf32, #tpu.memory_space<vmem>>, vector<8x32xf32>
    tpu.vector_store %arg7[%c0_12, %c0_13], %19 {strides = array<i32>} : memref<8x32xf32, #tpu.memory_space<vmem>>, vector<8x32xf32>,
    return
  }
  func.func @transform_0(%arg0: i32) -> i32 {
    %c0_i32 = arith.constant 0 : i32
    %c0_i32_0 = arith.constant 0 : i32
    return %c0_i32 : i32
  }
  func.func @transform_1(%arg0: i32) -> (i32, i32) {
    %c0_i32 = arith.constant 0 : i32
    %c0_i32_0 = arith.constant 0 : i32
    return %arg0, %c0_i32 : i32, i32
  }
  func.func @transform_2(%arg0: i32) -> (i32, i32) {
    %c0_i32 = arith.constant 0 : i32
    %c0_i32_0 = arith.constant 0 : i32
    %c0_i32_1 = arith.constant 0 : i32
    return %c0_i32, %c0_i32_0 : i32, i32
  }
  func.func @transform_3(%arg0: i32) -> (i32, i32) {
    %c0_i32 = arith.constant 0 : i32
    %c0_i32_0 = arith.constant 0 : i32
    %c0_i32_1 = arith.constant 0 : i32
    return %c0_i32, %c0_i32_0 : i32, i32
  }
  func.func @transform_4(%arg0: i32) -> (i32, i32) {
    %c0_i32 = arith.constant 0 : i32
    %c0_i32_0 = arith.constant 0 : i32
    %c0_i32_1 = arith.constant 0 : i32
    return %c0_i32, %c0_i32_0 : i32, i32
  }
  func.func @transform_5(%arg0: i32) -> (i32, i32) {
    %c0_i32 = arith.constant 0 : i32
    %c0_i32_0 = arith.constant 0 : i32
    %c0_i32_1 = arith.constant 0 : i32
    return %c0_i32, %c0_i32_0 : i32, i32
  }
  func.func @transform_6(%arg0: i32) -> (i32, i32) {
    %c0_i32 = arith.constant 0 : i32
    %c0_i32_0 = arith.constant 0 : i32
    return %arg0, %c0_i32 : i32, i32
  }
}

</mosaic_0001>

<llo_original>
// kernel: tpu_custom_call.1
$region0: #{tpu_custom_call.1}
  #allocation0 [shape = 'u32[]', space=smem, size = 0x4, offset = 0x4, fixed_abs, tag = 'smem constant byte address 0x4 - core index']
  #allocation1 [shape = 'u32[144,128]{1,0:T(1,128)}', space=vmem, size = 0x12000, scoped, tag = 'internal scratch']
  #allocation2 [shape = 'f32[1]{0:T(128)S(6)}', space=smem, size = 0x200, scoped, tag = 'scoped memory for tpu_custom_call.1']
  %s0 = inlined_call_operand.<no memory space> [shape: f32[1], index: 0, kind: input, shape index: {}]
  %s1 = inlined_call_operand.vmem [shape: f32[16,32], index: 1, kind: input, shape index: {}]
  %s2 = inlined_call_operand.vmem [shape: f32[32,64], index: 2, kind: input, shape index: {}]
  %s3 = inlined_call_operand.vmem [shape: f32[1,64], index: 3, kind: input, shape index: {}]
  %s4 = inlined_call_operand.vmem [shape: f32[64,32], index: 4, kind: input, shape index: {}]
  %s5 = inlined_call_operand.vmem [shape: f32[1,32], index: 5, kind: input, shape index: {}]
  %s6 = inlined_call_operand.hbm [shape: f32[16,32], index: 6, kind: output, shape index: {}]
  %s7 = sld [smem:[#allocation0]]
  $region57: #{tpu_custom_call.1} parent=0
    _
  %s9 = ssub.s32 1, %s7
  %s10 = scalar_select 0, %s9, %s7
  %11 = sst [smem:[#allocation2]] %s0
  $region1: #{tpu_custom_call.1} parent=0
    #allocation3 [shape = 'u8[8192]{0}', space=vmem, size = 0x2000, scoped, tag = 'output window, operand 0']
    #allocation4 [shape = 's32[2]{0}', space=sflag, size = 0x8, scoped, tag = 'scoped memory for tpu_custom_call.1']
    %12 = vsyncpa [#allocation4], 0
    %s13 = scalar_lea.sflag [#allocation4], 1
    %14 = vsyncpa %s13, 0
    loop: start=0, step=1, limit=4
    $region2: #{tpu_custom_call.1} parent=1 // loop_pre_header
      _
    $region3: #{tpu_custom_call.1} parent=1 // loop_header
      %s16 = sphi 0, %s20
      %p17 = scmp.ge.s32.totalorder %s16, 4
      %s24 = sphi 0, %s24
      %s26 = sphi 0, %s24
      %s27 = sphi 0, %s26
      %s41 = sphi 0, %s27
      %s47 = sphi 0, %s49
      %s50 = sphi 0, %s47
      %s51 = sphi 0, %s50
      %s67 = sphi 0, %s51
      %s71 = sphi 0, %s71
      %s73 = sphi 0, %s71
      %s74 = sphi 0, %s73
      %s88 = sphi 0, %s74
      %s92 = sphi 0, %s92
      %s94 = sphi 0, %s92
      %s95 = sphi 0, %s94
      %s109 = sphi 0, %s95
      %s113 = sphi 0, %s113
      %s115 = sphi 0, %s113
      %s116 = sphi 0, %s115
      %s130 = sphi 0, %s116
      %s134 = sphi 0, %s134
      %s136 = sphi 0, %s134
      %s137 = sphi 0, %s136
      %s151 = sphi 0, %s137
      %s157 = sphi 0, %s159
      %s160 = sphi 0, %s157
      %s161 = sphi 0, %s160
      %s177 = sphi 0, %s161
    $region4: #{tpu_custom_call.1} parent=1 // loop_header_branch
      %19 = sbr.rel (%p17) target = $region8
    $region5: #{tpu_custom_call.1} parent=1 // loop_body
      %s21 = ssub.s32 %s16, 1
      %s22 = ssub.s32 %s16, 2
      %s23 = sadd.s32 %s16, 1
      %s25 = sadd.s32 %s24, 1
      %p28 = scmp.eq.s32.totalorder %s16, 1
      %p29 = scmp.ne.s32.totalorder %s24, %s26
      %p30 = scmp.eq.s32.totalorder %s16, 0
      %p31 = por %p29, %p30
      %p32 = scmp.ne.s32.totalorder %s24, %s26
      %p33 = scmp.eq.s32.totalorder %s21, 1
      %p34 = por %p32, %p33
      %p35 = scmp.ne.s32.totalorder %s26, %s27
      %p36 = scmp.eq.s32.totalorder %s21, 0
      %p37 = por %p35, %p36
      %p38 = scmp.ne.s32.totalorder %s26, %s27
      %p39 = scmp.eq.s32.totalorder %s22, 1
      %p40 = por %p38, %p39
      %p42 = scmp.ne.s32.totalorder %s27, %s41
      %p43 = scmp.eq.s32.totalorder %s22, 0
      %p44 = por %p42, %p43
      %s45 = ssub.s32 %s16, %s23
      %p46 = scmp.eq.s32.totalorder %s45, 0
      %s48 = sadd.s32 %s47, 1
      %s49 = scalar_select %p46, %s47, %s48
      %p52 = pneg %p46
      %p53 = scmp.eq.s32.totalorder %s16, 1
      %p54 = por %p52, %p53
      %p55 = scmp.ne.s32.totalorder %s47, %s50
      %p56 = scmp.eq.s32.totalorder %s16, 0
      %p57 = por %p55, %p56
      %p58 = scmp.ne.s32.totalorder %s47, %s50
      %p59 = scmp.eq.s32.totalorder %s21, 1
      %p60 = por %p58, %p59
      %p61 = scmp.ne.s32.totalorder %s50, %s51
      %p62 = scmp.eq.s32.totalorder %s21, 0
      %p63 = por %p61, %p62
      %p64 = scmp.ne.s32.totalorder %s50, %s51
      %p65 = scmp.eq.s32.totalorder %s22, 1
      %p66 = por %p64, %p65
      %p68 = scmp.ne.s32.totalorder %s51, %s67
      %p69 = scmp.eq.s32.totalorder %s22, 0
      %p70 = por %p68, %p69
      %s72 = sadd.s32 %s71, 1
      %p75 = scmp.eq.s32.totalorder %s16, 1
      %p76 = scmp.ne.s32.totalorder %s71, %s73
      %p77 = scmp.eq.s32.totalorder %s16, 0
      %p78 = por %p76, %p77
      %p79 = scmp.ne.s32.totalorder %s71, %s73
      %p80 = scmp.eq.s32.totalorder %s21, 1
      %p81 = por %p79, %p80
      %p82 = scmp.ne.s32.totalorder %s73, %s74
      %p83 = scmp.eq.s32.totalorder %s21, 0
      %p84 = por %p82, %p83
      %p85 = scmp.ne.s32.totalorder %s73, %s74
      %p86 = scmp.eq.s32.totalorder %s22, 1
      %p87 = por %p85, %p86
      %p89 = scmp.ne.s32.totalorder %s74, %s88
      %p90 = scmp.eq.s32.totalorder %s22, 0
      %p91 = por %p89, %p90
      %s93 = sadd.s32 %s92, 1
      %p96 = scmp.eq.s32.totalorder %s16, 1
      %p97 = scmp.ne.s32.totalorder %s92, %s94
      %p98 = scmp.eq.s32.totalorder %s16, 0
      %p99 = por %p97, %p98
      %p100 = scmp.ne.s32.totalorder %s92, %s94
      %p101 = scmp.eq.s32.totalorder %s21, 1
      %p102 = por %p100, %p101
      %p103 = scmp.ne.s32.totalorder %s94, %s95
      %p104 = scmp.eq.s32.totalorder %s21, 0
      %p105 = por %p103, %p104
      %p106 = scmp.ne.s32.totalorder %s94, %s95
      %p107 = scmp.eq.s32.totalorder %s22, 1
      %p108 = por %p106, %p107
      %p110 = scmp.ne.s32.totalorder %s95, %s109
      %p111 = scmp.eq.s32.totalorder %s22, 0
      %p112 = por %p110, %p111
      %s114 = sadd.s32 %s113, 1
      %p117 = scmp.eq.s32.totalorder %s16, 1
      %p118 = scmp.ne.s32.totalorder %s113, %s115
      %p119 = scmp.eq.s32.totalorder %s16, 0
      %p120 = por %p118, %p119
      %p121 = scmp.ne.s32.totalorder %s113, %s115
      %p122 = scmp.eq.s32.totalorder %s21, 1
      %p123 = por %p121, %p122
      %p124 = scmp.ne.s32.totalorder %s115, %s116
      %p125 = scmp.eq.s32.totalorder %s21, 0
      %p126 = por %p124, %p125
      %p127 = scmp.ne.s32.totalorder %s115, %s116
      %p128 = scmp.eq.s32.totalorder %s22, 1
      %p129 = por %p127, %p128
      %p131 = scmp.ne.s32.totalorder %s116, %s130
      %p132 = scmp.eq.s32.totalorder %s22, 0
      %p133 = por %p131, %p132
      %s135 = sadd.s32 %s134, 1
      %p138 = scmp.eq.s32.totalorder %s16, 1
      %p139 = scmp.ne.s32.totalorder %s134, %s136
      %p140 = scmp.eq.s32.totalorder %s16, 0
      %p141 = por %p139, %p140
      %p142 = scmp.ne.s32.totalorder %s134, %s136
      %p143 = scmp.eq.s32.totalorder %s21, 1
      %p144 = por %p142, %p143
      %p145 = scmp.ne.s32.totalorder %s136, %s137
      %p146 = scmp.eq.s32.totalorder %s21, 0
      %p147 = por %p145, %p146
      %p148 = scmp.ne.s32.totalorder %s136, %s137
      %p149 = scmp.eq.s32.totalorder %s22, 1
      %p150 = por %p148, %p149
      %p152 = scmp.ne.s32.totalorder %s137, %s151
      %p153 = scmp.eq.s32.totalorder %s22, 0
      %p154 = por %p152, %p153
      %s155 = ssub.s32 %s16, %s23
      %p156 = scmp.eq.s32.totalorder %s155, 0
      %s158 = sadd.s32 %s157, 1
      %s159 = scalar_select %p156, %s157, %s158
      %p162 = pneg %p156
      %p163 = scmp.eq.s32.totalorder %s16, 1
      %p164 = por %p162, %p163
      %p165 = scmp.ne.s32.totalorder %s157, %s160
      %p166 = scmp.eq.s32.totalorder %s16, 0
      %p167 = por %p165, %p166
      %p168 = scmp.ne.s32.totalorder %s157, %s160
      %p169 = scmp.eq.s32.totalorder %s21, 1
      %p170 = por %p168, %p169
      %p171 = scmp.ne.s32.totalorder %s160, %s161
      %p172 = scmp.eq.s32.totalorder %s21, 0
      %p173 = por %p171, %p172
      %p174 = scmp.ne.s32.totalorder %s160, %s161
      %p175 = scmp.eq.s32.totalorder %s22, 1
      %p176 = por %p174, %p175
      %p178 = scmp.ne.s32.totalorder %s161, %s177
      %p179 = scmp.eq.s32.totalorder %s22, 0
      %p180 = por %p178, %p179
      %p181 = scmp.le.s32.totalorder 1, %s16
      %p182 = scmp.lt.s32.totalorder %s16, 3
      %p183 = pnand %p181, %p182
      %p184 = pneg %p183
      // Predicated region
      $region9: #{tpu_custom_call.1} parent=5 // pred_check
        _
      $region10: #{tpu_custom_call.1} parent=5 // pred_check_branch
        %186 = sbr.rel (%p183) target = $region12
      $region11: #{tpu_custom_call.1} parent=5 // pred_region
        %s187 = ssub.s32 %s16, 1
        // Predicated region
        $region13: #{tpu_custom_call.1} parent=11 // pred_check
          %p188 = pneg %p37
        $region14: #{tpu_custom_call.1} parent=11 // pred_check_branch
          %190 = sbr.rel (%p188) target = $region16
        $region15: #{tpu_custom_call.1} parent=11 // pred_region
          _
        $region16: #{tpu_custom_call.1} parent=11 // pred_fallthru
          _
        // Predicated region
        $region17: #{tpu_custom_call.1} parent=11 // pred_check
          %p191 = pneg %p84
        $region18: #{tpu_custom_call.1} parent=11 // pred_check_branch
          %193 = sbr.rel (%p191) target = $region20
        $region19: #{tpu_custom_call.1} parent=11 // pred_region
          _
        $region20: #{tpu_custom_call.1} parent=11 // pred_fallthru
          _
        // Predicated region
        $region21: #{tpu_custom_call.1} parent=11 // pred_check
          %p194 = pneg %p105
        $region22: #{tpu_custom_call.1} parent=11 // pred_check_branch
          %196 = sbr.rel (%p194) target = $region24
        $region23: #{tpu_custom_call.1} parent=11 // pred_region
          _
        $region24: #{tpu_custom_call.1} parent=11 // pred_fallthru
          _
        // Predicated region
        $region25: #{tpu_custom_call.1} parent=11 // pred_check
          %p197 = pneg %p126
        $region26: #{tpu_custom_call.1} parent=11 // pred_check_branch
          %199 = sbr.rel (%p197) target = $region28
        $region27: #{tpu_custom_call.1} parent=11 // pred_region
          _
        $region28: #{tpu_custom_call.1} parent=11 // pred_fallthru
          _
        // Predicated region
        $region29: #{tpu_custom_call.1} parent=11 // pred_check
          %p200 = pneg %p147
        $region30: #{tpu_custom_call.1} parent=11 // pred_check_branch
          %202 = sbr.rel (%p200) target = $region32
        $region31: #{tpu_custom_call.1} parent=11 // pred_region
          _
        $region32: #{tpu_custom_call.1} parent=11 // pred_fallthru
          _
      $region12: #{tpu_custom_call.1} parent=5 // pred_fallthru
        _
      %p203 = scmp.lt.s32.totalorder %s16, 2
      // Predicated region
      $region33: #{tpu_custom_call.1} parent=5 // pred_check
        %p204 = pneg %p203
      $region34: #{tpu_custom_call.1} parent=5 // pred_check_branch
        %206 = sbr.rel (%p204) target = $region36
      $region35: #{tpu_custom_call.1} parent=5 // pred_region
        // Predicated region
        $region37: #{tpu_custom_call.1} parent=35 // pred_check
          %p207 = pneg %p57
        $region38: #{tpu_custom_call.1} parent=35 // pred_check_branch
          %209 = sbr.rel (%p207) target = $region40
        $region39: #{tpu_custom_call.1} parent=35 // pred_region
          %p210 = scmp.lt.s32.totalorder %s16, 1
          %s211 = scalar_select %p210, %s16, 1
          %s212 = smul.addr %s211, 8
          %s213 = scalar_lea.vmem %s1, %s212
        $region40: #{tpu_custom_call.1} parent=35 // pred_fallthru
          _
      $region36: #{tpu_custom_call.1} parent=5 // pred_fallthru
        _
      %p214 = scmp.le.s32.totalorder 1, %s16
      %p215 = scmp.lt.s32.totalorder %s16, 3
      %p216 = pnand %p214, %p215
      %p217 = pneg %p216
      // Predicated region
      $region41: #{tpu_custom_call.1} parent=5 // pred_check
        _
      $region42: #{tpu_custom_call.1} parent=5 // pred_check_branch
        %219 = sbr.rel (%p216) target = $region44
      $region43: #{tpu_custom_call.1} parent=5 // pred_region
        %s220 = ssub.s32 %s16, 1
        %p221 = pneg %p37
        %p222 = pneg %p34
        %p223 = scmp.lt.s32.totalorder %s21, 1
        %s224 = scalar_select %p223, %s21, 1
        %s225 = smul.addr %s224, 8
        %s226 = scalar_lea.vmem %s1, %s225
        %p227 = pneg %p63
        %p228 = pneg %p60
        %p229 = pneg %p84
        %p230 = pneg %p81
        %p231 = pneg %p105
        %p232 = pneg %p102
        %p233 = pneg %p126
        %p234 = pneg %p123
        %p235 = pneg %p147
        %p236 = pneg %p144
        %p237 = pneg %p173
        %p238 = pneg %p170
        %s239 = sand.u32 %s160, 1
        %s240 = scalar_lea.sflag [#allocation4], %s239
        %s241 = sand.u32 %s160, 1
        %s242 = smul.addr %s241, 8
        %s243 = scalar_lea.vmem [#allocation3], %s242
        %p244 = scmp.lt.s32.totalorder %s21, 1
        %s245 = scalar_select %p244, %s21, 1
        %s246 = smul.addr %s245, 8
        %s247 = scalar_lea.vmem %s1, %s246
        %v248 = vld [vmem:[%s247] sm:$0xff]
        %v249 = vld [vmem:[%s2] sm:$0xff]
        %v250 = vld [vmem:[%s2 + $0x8] sm:$0xff]
        %v251 = vld [vmem:[%s2 + $0x10] sm:$0xff]
        %v252 = vld [vmem:[%s2 + $0x18] sm:$0xff]
        %v253 = vld [vmem:[%s4] sm:$0xff]
        %v254 = vld [vmem:[%s4 + $0x8] sm:$0xff]
        %v255 = vld [vmem:[%s4 + $0x10] sm:$0xff]
        %v256 = vld [vmem:[%s4 + $0x18] sm:$0xff]
        %v257 = vld [vmem:[%s4 + $0x20] sm:$0xff]
        %v258 = vld [vmem:[%s4 + $0x28] sm:$0xff]
        %v259 = vld [vmem:[%s4 + $0x30] sm:$0xff]
        %v260 = vld [vmem:[%s4 + $0x38] sm:$0xff]
        %v261 = vld [vmem:[%s3] sm:$0x1]
        %v263 = vlaneseq
        %v264 = vshrl.u32 %v263, 7
        %v265 = vsub.s32 0, %v264
        %v266 = vrot.slane %v261, %v265
        %vm268 = vcmask 261120
        %v270 = vsel %vm268, %v248, 0
        %272 = vmatprep.subr.mxu0 0.0
        %273 = vmatpush1.msra.mxu0 0.0
        %274 = vmatprep.subr.mxu0 0.0
        %275 = vmatpush1.msra.mxu0 0.0
        %276 = vmatprep.subr.mxu0 0.0
        %277 = vmatpush1.msra.mxu0 0.0
        %278 = vmatprep.subr.mxu0 0.0
        %279 = vmatpush1.msra.mxu0 0.0
        %280 = vmatprep.subr.mxu0 0.0
        %281 = vmatpush1.msra.mxu0 0.0
        %282 = vmatprep.subr.mxu0 0.0
        %283 = vmatpush1.msra.mxu0 0.0
        %284 = vmatprep.subr.mxu0 0.0
        %285 = vmatpush1.msra.mxu0 0.0
        %286 = vmatprep.subr.mxu0 0.0
        %287 = vmatpush1.msra.mxu0 0.0
        %288 = vmatprep.subr.mxu0 0.0
        %289 = vmatpush1.msra.mxu0 0.0
        %290 = vmatprep.subr.mxu0 0.0
        %291 = vmatpush1.msra.mxu0 0.0
        %292 = vmatprep.subr.mxu0 0.0
        %293 = vmatpush1.msra.mxu0 0.0
        %294 = vmatprep.subr.mxu0 0.0
        %295 = vmatpush1.msra.mxu0 0.0
        %296 = vmatprep.subr.mxu0 0.0
        %297 = vmatpush1.msra.mxu0 %v252
        %298 = vmatprep.subr.mxu0 0.0
        %299 = vmatpush1.msra.mxu0 %v251
        %300 = vmatprep.subr.mxu0 0.0
        %301 = vmatpush1.msra.mxu0 %v250
        %302 = vmatprep.subr.mxu0 0.0
        %303 = vmatpush1.msra.mxu0 %v249
        %304 = vmatprep.subr.mxu0 0.0
        %305 = vmatpush2.msra.mxu0 0.0
        %306 = vmatprep.subr.mxu0 0.0
        %307 = vmatpush2.msra.mxu0 0.0
        %308 = vmatprep.subr.mxu0 0.0
        %309 = vmatpush2.msra.mxu0 0.0
        %310 = vmatprep.subr.mxu0 0.0
        %311 = vmatpush2.msra.mxu0 0.0
        %312 = vmatprep.subr.mxu0 0.0
        %313 = vmatpush2.msra.mxu0 0.0
        %314 = vmatprep.subr.mxu0 0.0
        %315 = vmatpush2.msra.mxu0 0.0
        %316 = vmatprep.subr.mxu0 0.0
        %317 = vmatpush2.msra.mxu0 0.0
        %318 = vmatprep.subr.mxu0 0.0
        %319 = vmatpush2.msra.mxu0 0.0
        %320 = vmatprep.subr.mxu0 0.0
        %321 = vmatpush2.msra.mxu0 0.0
        %322 = vmatprep.subr.mxu0 0.0
        %323 = vmatpush2.msra.mxu0 0.0
        %324 = vmatprep.subr.mxu0 0.0
        %325 = vmatpush2.msra.mxu0 0.0
        %326 = vmatprep.subr.mxu0 0.0
        %327 = vmatpush2.msra.mxu0 0.0
        %328 = vmatprep.subr.mxu0 0.0
        %329 = vmatpush2.msra.mxu0 0.0
        %330 = vmatprep.subr.mxu0 0.0
        %331 = vmatpush2.msra.mxu0 0.0
        %332 = vmatprep.subr.mxu0 0.0
        %333 = vmatpush2.msra.mxu0 0.0
        %334 = vmatprep.subr.mxu0 0.0
        %335 = vmatpush2.msra.mxu0 0.0
        %336 = vmatprep.mubr.f32.mxu0 0.0
        %337 = vmatmul.mubr.f32.gmra.mxu0 %v270
        %v338 = vpop.f32.mrf.mxu0
        %v339 = vadd.f32 %v266, %v338
        %v340 = vpop.f32.mrf.mxu0
        %341 = vdwg.mxu0
        %v342 = vxor.u32 %v339, 2147483648
        %v343 = vmul.f32 %v342, 1.442695
        %v344 = vpow.pop %v343
        %v345 = vadd.f32 %v344, 1.0
        %v346 = vrcp.pop %v345
        %v347 = vmul.f32 1.0, %v346
        %v348 = vmul.f32 %v339, %v347
        %v349 = vld [vmem:[%s5] sm:$0x1]
        %v351 = vlaneseq
        %v352 = vshrl.u32 %v351, 7
        %v353 = vsub.s32 0, %v352
        %v354 = vrot.slane %v349, %v353
        %vm356 = vcmask 523264
        %v358 = vsel %vm356, %v348, 0
        %360 = vmatprep.subr.mxu0 0.0
        %361 = vmatpush1.msra.mxu0 0.0
        %362 = vmatprep.subr.mxu0 0.0
        %363 = vmatpush1.msra.mxu0 0.0
        %364 = vmatprep.subr.mxu0 0.0
        %365 = vmatpush1.msra.mxu0 0.0
        %366 = vmatprep.subr.mxu0 0.0
        %367 = vmatpush1.msra.mxu0 0.0
        %368 = vmatprep.subr.mxu0 0.0
        %369 = vmatpush1.msra.mxu0 0.0
        %370 = vmatprep.subr.mxu0 0.0
        %371 = vmatpush1.msra.mxu0 0.0
        %372 = vmatprep.subr.mxu0 0.0
        %373 = vmatpush1.msra.mxu0 0.0
        %374 = vmatprep.subr.mxu0 0.0
        %375 = vmatpush1.msra.mxu0 0.0
        %376 = vmatprep.subr.mxu0 0.0
        %377 = vmatpush1.msra.mxu0 %v260
        %378 = vmatprep.subr.mxu0 0.0
        %379 = vmatpush1.msra.mxu0 %v259
        %380 = vmatprep.subr.mxu0 0.0
        %381 = vmatpush1.msra.mxu0 %v258
        %382 = vmatprep.subr.mxu0 0.0
        %383 = vmatpush1.msra.mxu0 %v257
        %384 = vmatprep.subr.mxu0 0.0
        %385 = vmatpush1.msra.mxu0 %v256
        %386 = vmatprep.subr.mxu0 0.0
        %387 = vmatpush1.msra.mxu0 %v255
        %388 = vmatprep.subr.mxu0 0.0
        %389 = vmatpush1.msra.mxu0 %v254
        %390 = vmatprep.subr.mxu0 0.0
        %391 = vmatpush1.msra.mxu0 %v253
        %392 = vmatprep.subr.mxu0 0.0
        %393 = vmatpush2.msra.mxu0 0.0
        %394 = vmatprep.subr.mxu0 0.0
        %395 = vmatpush2.msra.mxu0 0.0
        %396 = vmatprep.subr.mxu0 0.0
        %397 = vmatpush2.msra.mxu0 0.0
        %398 = vmatprep.subr.mxu0 0.0
        %399 = vmatpush2.msra.mxu0 0.0
        %400 = vmatprep.subr.mxu0 0.0
        %401 = vmatpush2.msra.mxu0 0.0
        %402 = vmatprep.subr.mxu0 0.0
        %403 = vmatpush2.msra.mxu0 0.0
        %404 = vmatprep.subr.mxu0 0.0
        %405 = vmatpush2.msra.mxu0 0.0
        %406 = vmatprep.subr.mxu0 0.0
        %407 = vmatpush2.msra.mxu0 0.0
        %408 = vmatprep.subr.mxu0 0.0
        %409 = vmatpush2.msra.mxu0 0.0
        %410 = vmatprep.subr.mxu0 0.0
        %411 = vmatpush2.msra.mxu0 0.0
        %412 = vmatprep.subr.mxu0 0.0
        %413 = vmatpush2.msra.mxu0 0.0
        %414 = vmatprep.subr.mxu0 0.0
        %415 = vmatpush2.msra.mxu0 0.0
        %416 = vmatprep.subr.mxu0 0.0
        %417 = vmatpush2.msra.mxu0 0.0
        %418 = vmatprep.subr.mxu0 0.0
        %419 = vmatpush2.msra.mxu0 0.0
        %420 = vmatprep.subr.mxu0 0.0
        %421 = vmatpush2.msra.mxu0 0.0
        %422 = vmatprep.subr.mxu0 0.0
        %423 = vmatpush2.msra.mxu0 0.0
        %424 = vmatprep.mubr.f32.mxu0 0.0
        %425 = vmatmul.mubr.f32.gmra.mxu0 %v358
        %v426 = vpop.f32.mrf.mxu0
        %v427 = vadd.f32 %v354, %v426
        %v428 = vpop.f32.mrf.mxu0
        %429 = vdwg.mxu0
        %s430 = sld [smem:[#allocation2]]
        %v431 = vstv %s430
        %v432 = vmul.f32 %v427, %v431
        %433 = vst.msk [vmem:[%s243] sm:$0xff] %vm268, %v432
        %s434 = sand.u32 %s160, 1
        %s435 = scalar_lea.sflag [#allocation4], %s434
        %s436 = sand.u32 %s160, 1
        %s437 = smul.addr %s436, 8
        %s438 = scalar_lea.vmem [#allocation3], %s437
        // Predicated region
        $region45: #{tpu_custom_call.1} parent=43 // pred_check
          %p439 = pneg %p170
        $region46: #{tpu_custom_call.1} parent=43 // pred_check_branch
          %441 = sbr.rel (%p439) target = $region48
        $region47: #{tpu_custom_call.1} parent=43 // pred_region
          %s443 = ssub.s32 128, 128
          %444 = vsyncadd %s435, %s443
          %s445 = smul.addr %s21, 128
          %s446 = scalar_lea.hbm %s6, %s445
          %s448 = sshll.u32 %s438, 4
          %s449 = int_to_ptr.vmem [resolvable:$true] %s448
          %451 = dma.vmem_to_hbm [thread:$0]  %s449, 128, %s446, %s435
        $region48: #{tpu_custom_call.1} parent=43 // pred_fallthru
          _
      $region44: #{tpu_custom_call.1} parent=5 // pred_fallthru
        _
      %p452 = scmp.le.s32.totalorder 2, %s16
      // Predicated region
      $region49: #{tpu_custom_call.1} parent=5 // pred_check
        %p453 = pneg %p452
      $region50: #{tpu_custom_call.1} parent=5 // pred_check_branch
        %455 = sbr.rel (%p453) target = $region52
      $region51: #{tpu_custom_call.1} parent=5 // pred_region
        %s456 = ssub.s32 %s16, 2
        // Predicated region
        $region53: #{tpu_custom_call.1} parent=51 // pred_check
          %p457 = pneg %p176
        $region54: #{tpu_custom_call.1} parent=51 // pred_check_branch
          %459 = sbr.rel (%p457) target = $region56
        $region55: #{tpu_custom_call.1} parent=51 // pred_region
          %s460 = sand.u32 %s161, 1
          %s461 = scalar_lea.sflag [#allocation4], %s460
          %s462 = sand.u32 %s161, 1
          %s463 = smul.addr %s462, 8
          %s464 = scalar_lea.vmem [#allocation3], %s463
          %465 = dma.done %s461, 128
        $region56: #{tpu_custom_call.1} parent=51 // pred_fallthru
          _
      $region52: #{tpu_custom_call.1} parent=5 // pred_fallthru
        _
    $region6: #{tpu_custom_call.1} parent=1 // loop_footer
      %s20 = sadd.s32 1, %s16
    $region7: #{tpu_custom_call.1} parent=1 // loop_footer_branch
      %15 = sbr.rel target = $region3
    $region8: #{tpu_custom_call.1} parent=1 // loop_exit
      _
    %466 = vsyncpa [#allocation4], 1
    %s467 = scalar_lea.sflag [#allocation4], 1
    %468 = vsyncpa %s467, 1

</llo_original>
